<compile_context>
chip_gen: v7x
topology: tpu7x:2x2x1
jax: 0.10.0
libtpu: 0.0.40
codegen_flags: <defaults>
</compile_context>

<pallas_src>
import math
import jax
import jax.numpy as jnp
from jax.experimental import pallas as pl
from jax.experimental.pallas import tpu as pltpu


def make_mlp_kernel(n_layers, compute_dtype, epilogue_dtype, d_out):
    """Fused MLP kernel, batch-on-lanes layout.

    Kernel args: (x, w0, b0, w1, b1, ..., out) with
      x: [tb, d_in] (input dtype, typically f32), w_i: [out_i, in_i] compute_dtype,
      b_i: [out_i, 1] float32, out: [d_out, tb] float32.
    Each layer computes h = W @ h + b (lane-broadcast bias), ReLU between
    hidden layers only.
    """
    def kernel(x_ref, *refs):
        o_ref = refs[-1]
        wb = refs[:-1]
        # Transpose + downcast folded into the kernel: cast f32 -> bf16 (VPU),
        # then flip to batch-on-lanes [d_in, tb] on the XLU (vxpose slot).
        h = x_ref[...].astype(compute_dtype).T                # [d_in, tb]
        for i in range(n_layers):
            w_ref = wb[2 * i]                                  # [out, in]
            b_ref = wb[2 * i + 1]                              # [out, 1] f32
            last = (i == n_layers - 1)
            if last and d_out == 1:
                # Final single-row layer: MXU would be <3% utilized at M=1,
                # so do it as VPU broadcast-multiply + XLU sublane reduce.
                w_col = w_ref[...].astype(jnp.float32).T       # [hidden, 1]
                acc = jnp.sum(w_col * h.astype(jnp.float32),
                              axis=0, keepdims=True)           # [1, tb] f32
                h = acc + b_ref[...]
            else:
                acc = jnp.dot(w_ref[...], h,
                              preferred_element_type=jnp.float32)  # MXU, f32 acc
                if last:
                    h = acc + b_ref[...]                       # no activation
                else:
                    # Epilogue in epilogue_dtype: bf16 on v6e/v7x halves the
                    # VPU work and live-vreg footprint; f32 on v5e.
                    a = acc.astype(epilogue_dtype)
                    a = a + b_ref[...].astype(epilogue_dtype)  # lane-broadcast
                    a = jnp.maximum(a, 0.0)                    # ReLU
                    h = a.astype(compute_dtype)                # MXU dtype
        o_ref[...] = h.astype(o_ref.dtype)
    return kernel


def _default_epilogue_dtype(compute_dtype):
    # v5e has no bf16 VALU -> keep the epilogue in f32 there.
    try:
        kind = jax.devices()[0].device_kind.lower()
    except Exception:
        kind = ""
    if "v5" in kind:
        return jnp.float32
    return compute_dtype


def _pick_batch_tile(B):
    # Each grid step costs ~0.35 us of pipeline overhead, which dwarfs the
    # per-tile compute of this 16->32->32->1 net, so: single step for small
    # batches, large 128-aligned tiles for big ones. The ceiling on tb is
    # vreg pressure from the [hidden, tb] activations (f32 [32, 1024] is
    # already 32 vregs), not VMEM capacity (a double-buffered f32 [tb, 16]
    # x-tile is only ~0.5 MiB even at tb=4096 -- trivial on 64-128 MiB VMEM).
    if B <= 4096:
        return ((B + 127) // 128) * 128       # whole (padded) batch, one step
    for t in (4096, 2048, 1024, 512, 256, 128):
        if B % t == 0:
            return t
    return 2048                               # pad B up to a multiple of 2048


def prepare_params(params, compute_dtype=jnp.bfloat16):
    """One-time cast/reshape of (W, b) pairs into kernel operands.

    Call ONCE (e.g. at model init) so the small cast/reshape XLA ops and their
    HBM writes do not rerun on every forward call.
    Returns a flat list [w0, b0, w1, b1, ...] with w_i [out, in] compute_dtype
    and b_i [out, 1] float32.
    """
    flat = []
    for (w, b) in params:
        flat.append(jnp.asarray(w, compute_dtype))                 # [out, in]
        flat.append(jnp.asarray(b, jnp.float32).reshape(-1, 1))    # [out, 1]
    return flat


def heat_pde_ann_forward(x, prepared, *, tb=None,
                         compute_dtype=jnp.bfloat16, epilogue_dtype=None):
    """
    x:        [B, neurons[0]]  float32 (native layout; no wrapper transpose/cast)
    prepared: flat list from prepare_params()
    returns   [B, neurons[-1]] float32
    """
    B, d_in = x.shape
    n_layers = len(prepared) // 2
    d_out = prepared[-2].shape[0]

    if epilogue_dtype is None:
        epilogue_dtype = _default_epilogue_dtype(compute_dtype)
    if tb is None:
        tb = _pick_batch_tile(B)
    tb = max(128, ((tb + 127) // 128) * 128)   # always lane-aligned tiles

    B_pad = pl.cdiv(B, tb) * tb
    x_in = x
    if B_pad != B:
        x_in = jnp.pad(x_in, ((0, B_pad - B), (0, 0)))
    n_tiles = B_pad // tb

    kernel = make_mlp_kernel(n_layers, compute_dtype, epilogue_dtype, d_out)

    # x: native [B, d_in] layout; block last dim equals the full array dim, so
    # the (8,128) rule is satisfied. If a large-B profile shows exposed DMA
    # waits on this stream, add pipeline_mode=pl.Buffered(3) here.
    in_specs = [pl.BlockSpec((tb, d_in), lambda i: (i, 0))]
    flat_args = [x_in]
    for j in range(n_layers):
        # Constants across the grid -> VMEM-resident, untiled (no double buffer).
        in_specs.append(pl.BlockSpec(memory_space=pltpu.MemorySpace.VMEM))
        in_specs.append(pl.BlockSpec(memory_space=pltpu.MemorySpace.VMEM))
        flat_args.append(prepared[2 * j])
        flat_args.append(prepared[2 * j + 1])

    out_spec = pl.BlockSpec((d_out, tb), lambda i: (0, i))    # lane-dense output

    # TODO(synk): on v7x (2 TCs/chip) shard the batch axis with
    # pltpu.CORE_PARALLEL (or pl.core_map) when n_tiles >= 2; plain
    # "parallel"/"arbitrary" has near-zero measured impact on 1-TC chips.
    sem = ("arbitrary",) if n_tiles == 1 else ("parallel",)

    out_t = pl.pallas_call(
        kernel,
        out_shape=jax.ShapeDtypeStruct((d_out, B_pad), jnp.float32),
        grid=(n_tiles,),
        in_specs=in_specs,
        out_specs=out_spec,
        compiler_params=pltpu.CompilerParams(dimension_semantics=sem),
    )(*flat_args)

    return out_t.T[:B].astype(x.dtype)                        # [B, d_out]


def init_params(neurons, key):
    """Kaiming-uniform (relu) weights, zero biases (Heat_PDE_ANN.initialize_weights).
    Weights are kept in PyTorch [out, in] orientation (kernel computes W @ h)."""
    params = []
    for i in range(len(neurons) - 1):
        fan_in, fan_out = neurons[i], neurons[i + 1]
        key, sub = jax.random.split(key)
        bound = math.sqrt(6.0 / fan_in)   # gain(relu)=sqrt(2), bound=gain*sqrt(3/fan_in)
        w = jax.random.uniform(sub, (fan_out, fan_in), jnp.float32,
                               minval=-bound, maxval=bound)
        b = jnp.zeros((fan_out,), jnp.float32)
        params.append((w, b))
    return params


def reference_forward(x, params, compute_dtype=jnp.bfloat16):
    """Pure-JAX reference with the same operand casts as the kernel
    (bf16 MXU operands, f32 accumulation; bias=0 so the bf16 epilogue on
    v6e/v7x is numerically identical to this f32-epilogue reference)."""
    h = x.astype(compute_dtype).astype(jnp.float32)
    n = len(params)
    for i, (w, b) in enumerate(params):
        w32 = w.astype(compute_dtype).astype(jnp.float32)
        h = h @ w32.T + b
        if i < n - 1:
            h = jnp.maximum(h, 0.0)
            h = h.astype(compute_dtype).astype(jnp.float32)
    return h


if __name__ == "__main__":
    # neurons = [d_space, hidden, hidden, 1] as implied by the module.
    neurons = [16, 32, 32, 1]
    batch = 256

    key = jax.random.PRNGKey(0)
    key, kx = jax.random.split(key)
    # UniformValueSampler analogue over space_bounds.
    space_bounds = (-1.0, 1.0)
    x = jax.random.uniform(kx, (batch, neurons[0]), jnp.float32,
                           minval=space_bounds[0], maxval=space_bounds[1])

    params = init_params(neurons, key)
    prepared = prepare_params(params)          # one-time cast/reshape

    # Default tile choice -> single grid step for B=256 (tb=256, lane-aligned).
    out = heat_pde_ann_forward(x, prepared)
    out = jax.block_until_ready(out)

    ref = reference_forward(x, params)
    assert out.shape == (batch, neurons[-1])
    assert jnp.allclose(out, ref, atol=1e-2, rtol=1e-2), \
        float(jnp.max(jnp.abs(out - ref)))

    # TODO(synk): loss()/test_loss()/UniformValueSampler are training-time host
    # utilities outside forward(); not implemented as kernels.
    print("KERNEL_OK")
</pallas_src>

<mosaic_0001>
module attributes {stable_mosaic.version = 11 : i64} {
  func.func @kernel(%arg0: i32, %arg1: memref<256x16xf32, #tpu.memory_space<vmem>>, %arg2: memref<32x16xbf16, #tpu.memory_space<vmem>>, %arg3: memref<32x1xf32, #tpu.memory_space<vmem>>, %arg4: memref<32x32xbf16, #tpu.memory_space<vmem>>, %arg5: memref<32x1xf32, #tpu.memory_space<vmem>>, %arg6: memref<1x32xbf16, #tpu.memory_space<vmem>>, %arg7: memref<1x1xf32, #tpu.memory_space<vmem>>, %arg8: memref<1x256xf32, #tpu.memory_space<vmem>>) attributes {dimension_semantics = [#tpu.dimension_semantics<arbitrary>], iteration_bounds = array<i64: 1>, scalar_prefetch = 0 : i64, scratch_operands = 0 : i64, tpu.core_type = #tpu.core_type<tc>, window_params = [{transform_indices = @transform_0, window_bounds = array<i64: 256, 16>}, {pipeline_mode = #tpu.pipeline_mode<synchronous>, transform_indices = @transform_1, window_bounds = array<i64: 32, 16>}, {pipeline_mode = #tpu.pipeline_mode<synchronous>, transform_indices = @transform_2, window_bounds = array<i64: 32, 1>}, {pipeline_mode = #tpu.pipeline_mode<synchronous>, transform_indices = @transform_3, window_bounds = array<i64: 32, 32>}, {pipeline_mode = #tpu.pipeline_mode<synchronous>, transform_indices = @transform_4, window_bounds = array<i64: 32, 1>}, {pipeline_mode = #tpu.pipeline_mode<synchronous>, transform_indices = @transform_5, window_bounds = array<i64: 1, 32>}, {pipeline_mode = #tpu.pipeline_mode<synchronous>, transform_indices = @transform_6, window_bounds = array<i64: 1, 1>}, {transform_indices = @transform_7, window_bounds = array<i64: 1, 256>}]} {
    %c0 = arith.constant 0 : index
    %c0_0 = arith.constant 0 : index
    %0 = vector.load %arg1[%c0, %c0_0] : memref<256x16xf32, #tpu.memory_space<vmem>>, vector<256x16xf32>
    %1 = arith.truncf %0 : vector<256x16xf32> to vector<256x16xbf16>
    %2 = tpu.transpose %1, [1, 0] : vector<256x16xbf16> -> vector<16x256xbf16>
    %c0_1 = arith.constant 0 : index
    %c0_2 = arith.constant 0 : index
    %3 = vector.load %arg2[%c0_1, %c0_2] : memref<32x16xbf16, #tpu.memory_space<vmem>>, vector<32x16xbf16>
    %cst = arith.constant dense<0.000000e+00> : vector<32x256xf32>
    %4 = tpu.matmul %3, %2, %cst {dimension_numbers = #tpu.dot_dimension_numbers<[1], [0], [0], [1], [0, 0, 1, 1], [], []>} : vector<32x16xbf16>, vector<16x256xbf16>, vector<32x256xf32> -> vector<32x256xf32>
    %5 = arith.truncf %4 : vector<32x256xf32> to vector<32x256xbf16>
    %c0_3 = arith.constant 0 : index
    %c0_4 = arith.constant 0 : index
    %6 = vector.load %arg3[%c0_3, %c0_4] : memref<32x1xf32, #tpu.memory_space<vmem>>, vector<32x1xf32>
    %7 = arith.truncf %6 : vector<32x1xf32> to vector<32x1xbf16>
    %8 = vector.broadcast %7 : vector<32x1xbf16> to vector<32x256xbf16>
    %9 = arith.addf %5, %8 : vector<32x256xbf16>
    %cst_5 = arith.constant 0.000000e+00 : bf16
    %10 = vector.broadcast %cst_5 : bf16 to vector<32x256xbf16>
    %11 = arith.maximumf %9, %10 : vector<32x256xbf16>
    %c0_6 = arith.constant 0 : index
    %c0_7 = arith.constant 0 : index
    %12 = vector.load %arg4[%c0_6, %c0_7] : memref<32x32xbf16, #tpu.memory_space<vmem>>, vector<32x32xbf16>
    %cst_8 = arith.constant dense<0.000000e+00> : vector<32x256xf32>
    %13 = tpu.matmul %12, %11, %cst_8 {dimension_numbers = #tpu.dot_dimension_numbers<[1], [0], [0], [1], [0, 0, 1, 1], [], []>} : vector<32x32xbf16>, vector<32x256xbf16>, vector<32x256xf32> -> vector<32x256xf32>
    %14 = arith.truncf %13 : vector<32x256xf32> to vector<32x256xbf16>
    %c0_9 = arith.constant 0 : index
    %c0_10 = arith.constant 0 : index
    %15 = vector.load %arg5[%c0_9, %c0_10] : memref<32x1xf32, #tpu.memory_space<vmem>>, vector<32x1xf32>
    %16 = arith.truncf %15 : vector<32x1xf32> to vector<32x1xbf16>
    %17 = vector.broadcast %16 : vector<32x1xbf16> to vector<32x256xbf16>
    %18 = arith.addf %14, %17 : vector<32x256xbf16>
    %cst_11 = arith.constant 0.000000e+00 : bf16
    %19 = vector.broadcast %cst_11 : bf16 to vector<32x256xbf16>
    %20 = arith.maximumf %18, %19 : vector<32x256xbf16>
    %c0_12 = arith.constant 0 : index
    %c0_13 = arith.constant 0 : index
    %21 = vector.load %arg6[%c0_12, %c0_13] : memref<1x32xbf16, #tpu.memory_space<vmem>>, vector<1x32xbf16>
    %22 = arith.extf %21 : vector<1x32xbf16> to vector<1x32xf32>
    %23 = tpu.transpose %22, [1, 0] : vector<1x32xf32> -> vector<32x1xf32>
    %24 = arith.extf %20 : vector<32x256xbf16> to vector<32x256xf32>
    %25 = vector.broadcast %23 : vector<32x1xf32> to vector<32x256xf32>
    %26 = arith.mulf %25, %24 : vector<32x256xf32>
    %cst_14 = arith.constant dense<0.000000e+00> : vector<256xf32>
    %27 = vector.multi_reduction <add>, %26, %cst_14 [0] : vector<32x256xf32> to vector<256xf32>
    %28 = vector.shape_cast %27 : vector<256xf32> to vector<1x256xf32>
    %c0_15 = arith.constant 0 : index
    %c0_16 = arith.constant 0 : index
    %29 = vector.load %arg7[%c0_15, %c0_16] : memref<1x1xf32, #tpu.memory_space<vmem>>, vector<1x1xf32>
    %30 = vector.broadcast %29 : vector<1x1xf32> to vector<1x256xf32>
    %31 = arith.addf %28, %30 : vector<1x256xf32>
    %c0_17 = arith.constant 0 : index
    %c0_18 = arith.constant 0 : index
    %32 = vector.load %arg8[%c0_17, %c0_18] : memref<1x256xf32, #tpu.memory_space<vmem>>, vector<1x256xf32>
    tpu.vector_store %arg8[%c0_17, %c0_18], %31 {strides = array<i32>} : memref<1x256xf32, #tpu.memory_space<vmem>>, vector<1x256xf32>,
    return
  }
  func.func @transform_0(%arg0: i32) -> (i32, i32) {
    %c0_i32 = arith.constant 0 : i32
    %c0_i32_0 = arith.constant 0 : i32
    return %arg0, %c0_i32 : i32, i32
  }
  func.func @transform_1(%arg0: i32) -> (i32, i32) {
    %c0_i32 = arith.constant 0 : i32
    %c0_i32_0 = arith.constant 0 : i32
    %c0_i32_1 = arith.constant 0 : i32
    return %c0_i32, %c0_i32_0 : i32, i32
  }
  func.func @transform_2(%arg0: i32) -> (i32, i32) {
    %c0_i32 = arith.constant 0 : i32
    %c0_i32_0 = arith.constant 0 : i32
    %c0_i32_1 = arith.constant 0 : i32
    return %c0_i32, %c0_i32_0 : i32, i32
  }
  func.func @transform_3(%arg0: i32) -> (i32, i32) {
    %c0_i32 = arith.constant 0 : i32
    %c0_i32_0 = arith.constant 0 : i32
    %c0_i32_1 = arith.constant 0 : i32
    return %c0_i32, %c0_i32_0 : i32, i32
  }
  func.func @transform_4(%arg0: i32) -> (i32, i32) {
    %c0_i32 = arith.constant 0 : i32
    %c0_i32_0 = arith.constant 0 : i32
    %c0_i32_1 = arith.constant 0 : i32
    return %c0_i32, %c0_i32_0 : i32, i32
  }
  func.func @transform_5(%arg0: i32) -> (i32, i32) {
    %c0_i32 = arith.constant 0 : i32
    %c0_i32_0 = arith.constant 0 : i32
    %c0_i32_1 = arith.constant 0 : i32
    return %c0_i32, %c0_i32_0 : i32, i32
  }
  func.func @transform_6(%arg0: i32) -> (i32, i32) {
    %c0_i32 = arith.constant 0 : i32
    %c0_i32_0 = arith.constant 0 : i32
    %c0_i32_1 = arith.constant 0 : i32
    return %c0_i32, %c0_i32_0 : i32, i32
  }
  func.func @transform_7(%arg0: i32) -> (i32, i32) {
    %c0_i32 = arith.constant 0 : i32
    %c0_i32_0 = arith.constant 0 : i32
    return %c0_i32, %arg0 : i32, i32
  }
}

</mosaic_0001>

<llo_original>
// kernel: tpu_custom_call.1
$region0: #{tpu_custom_call.1}
  #allocation0 [shape = 'u32[]', space=smem, size = 0x4, offset = 0x4, fixed_abs, tag = 'smem constant byte address 0x4 - core index']
  #allocation1 [shape = 'u32[144,128]{1,0:T(1,128)}', space=vmem, size = 0x12000, scoped, tag = 'internal scratch']
  #allocation2 [shape = 'f32[1,1]{1,0:T(1,128)S(1)}', space=vmem, size = 0x200, scoped, tag = 'scoped memory for tpu_custom_call.1']
  %s0 = inlined_call_operand.vmem [shape: f32[256,16], index: 0, kind: input, shape index: {}]
  %s1 = inlined_call_operand.vmem [shape: bf16[32,16], index: 1, kind: input, shape index: {}]
  %s2 = inlined_call_operand.vmem [shape: f32[32,1], index: 2, kind: input, shape index: {}]
  %s3 = inlined_call_operand.vmem [shape: bf16[32,32], index: 3, kind: input, shape index: {}]
  %s4 = inlined_call_operand.vmem [shape: f32[32,1], index: 4, kind: input, shape index: {}]
  %s5 = inlined_call_operand.vmem [shape: bf16[1,32], index: 5, kind: input, shape index: {}]
  %s6 = inlined_call_operand.<no memory space> [shape: f32[1,1], index: 6, kind: input, shape index: {}]
  %s7 = inlined_call_operand.hbm [shape: f32[1,256], index: 7, kind: output, shape index: {}]
  %s8 = sld [smem:[#allocation0]]
  $region38: #{tpu_custom_call.1} parent=0
    _
  %s10 = ssub.s32 1, %s8
  %s11 = scalar_select 0, %s10, %s8
  %v12 = vstv %s6
  %13 = vst [vmem:[#allocation2] sm:$0x1] %v12
  $region1: #{tpu_custom_call.1} parent=0
    #allocation3 [shape = 'u8[1024]{0}', space=vmem, size = 0x400, scoped, tag = 'output window, operand 0, single buffered']
    #allocation4 [shape = 's32[1]{0}', space=sflag, size = 0x4, scoped, tag = 'scoped memory for tpu_custom_call.1']
    %14 = vsyncpa [#allocation4], 0
    // Predicated region
    $region2: #{tpu_custom_call.1} parent=1 // pred_check
      _
    $region3: #{tpu_custom_call.1} parent=1 // pred_check_branch
      %16 = sbr.rel (0) target = $region5
    $region4: #{tpu_custom_call.1} parent=1 // pred_region
      _
    $region5: #{tpu_custom_call.1} parent=1 // pred_fallthru
      _
    // Predicated region
    $region6: #{tpu_custom_call.1} parent=1 // pred_check
      _
    $region7: #{tpu_custom_call.1} parent=1 // pred_check_branch
      %18 = sbr.rel (0) target = $region9
    $region8: #{tpu_custom_call.1} parent=1 // pred_region
      _
    $region9: #{tpu_custom_call.1} parent=1 // pred_fallthru
      _
    // Predicated region
    $region10: #{tpu_custom_call.1} parent=1 // pred_check
      _
    $region11: #{tpu_custom_call.1} parent=1 // pred_check_branch
      %20 = sbr.rel (0) target = $region13
    $region12: #{tpu_custom_call.1} parent=1 // pred_region
      _
    $region13: #{tpu_custom_call.1} parent=1 // pred_fallthru
      _
    // Predicated region
    $region14: #{tpu_custom_call.1} parent=1 // pred_check
      _
    $region15: #{tpu_custom_call.1} parent=1 // pred_check_branch
      %22 = sbr.rel (0) target = $region17
    $region16: #{tpu_custom_call.1} parent=1 // pred_region
      _
    $region17: #{tpu_custom_call.1} parent=1 // pred_fallthru
      _
    // Predicated region
    $region18: #{tpu_custom_call.1} parent=1 // pred_check
      _
    $region19: #{tpu_custom_call.1} parent=1 // pred_check_branch
      %24 = sbr.rel (0) target = $region21
    $region20: #{tpu_custom_call.1} parent=1 // pred_region
      _
    $region21: #{tpu_custom_call.1} parent=1 // pred_fallthru
      _
    // Predicated region
    $region22: #{tpu_custom_call.1} parent=1 // pred_check
      _
    $region23: #{tpu_custom_call.1} parent=1 // pred_check_branch
      %26 = sbr.rel (0) target = $region25
    $region24: #{tpu_custom_call.1} parent=1 // pred_region
      _
    $region25: #{tpu_custom_call.1} parent=1 // pred_fallthru
      _
    // Predicated region
    $region26: #{tpu_custom_call.1} parent=1 // pred_check
      _
    $region27: #{tpu_custom_call.1} parent=1 // pred_check_branch
      %28 = sbr.rel (0) target = $region29
    $region28: #{tpu_custom_call.1} parent=1 // pred_region
      _
    $region29: #{tpu_custom_call.1} parent=1 // pred_fallthru
      _
    %v30 = vld [vmem:[%s0] sm:$0xff]
    %v31 = vld [vmem:[%s0 + $0x8] sm:$0xff]
    %v32 = vld [vmem:[%s0 + $0x10] sm:$0xff]
    %v33 = vld [vmem:[%s0 + $0x18] sm:$0xff]
    %v34 = vld [vmem:[%s0 + $0x20] sm:$0xff]
    %v35 = vld [vmem:[%s0 + $0x28] sm:$0xff]
    %v36 = vld [vmem:[%s0 + $0x30] sm:$0xff]
    %v37 = vld [vmem:[%s0 + $0x38] sm:$0xff]
    %v38 = vld [vmem:[%s0 + $0x40] sm:$0xff]
    %v39 = vld [vmem:[%s0 + $0x48] sm:$0xff]
    %v40 = vld [vmem:[%s0 + $0x50] sm:$0xff]
    %v41 = vld [vmem:[%s0 + $0x58] sm:$0xff]
    %v42 = vld [vmem:[%s0 + $0x60] sm:$0xff]
    %v43 = vld [vmem:[%s0 + $0x68] sm:$0xff]
    %v44 = vld [vmem:[%s0 + $0x70] sm:$0xff]
    %v45 = vld [vmem:[%s0 + $0x78] sm:$0xff]
    %v46 = vld [vmem:[%s0 + $0x80] sm:$0xff]
    %v47 = vld [vmem:[%s0 + $0x88] sm:$0xff]
    %v48 = vld [vmem:[%s0 + $0x90] sm:$0xff]
    %v49 = vld [vmem:[%s0 + $0x98] sm:$0xff]
    %v50 = vld [vmem:[%s0 + $0xa0] sm:$0xff]
    %v51 = vld [vmem:[%s0 + $0xa8] sm:$0xff]
    %v52 = vld [vmem:[%s0 + $0xb0] sm:$0xff]
    %v53 = vld [vmem:[%s0 + $0xb8] sm:$0xff]
    %v54 = vld [vmem:[%s0 + $0xc0] sm:$0xff]
    %v55 = vld [vmem:[%s0 + $0xc8] sm:$0xff]
    %v56 = vld [vmem:[%s0 + $0xd0] sm:$0xff]
    %v57 = vld [vmem:[%s0 + $0xd8] sm:$0xff]
    %v58 = vld [vmem:[%s0 + $0xe0] sm:$0xff]
    %v59 = vld [vmem:[%s0 + $0xe8] sm:$0xff]
    %v60 = vld [vmem:[%s0 + $0xf0] sm:$0xff]
    %v61 = vld [vmem:[%s0 + $0xf8] sm:$0xff]
    %v62 = vpack.c.bf16 %v31, %v30
    %v63 = vpack.c.bf16 %v33, %v32
    %v64 = vpack.c.bf16 %v35, %v34
    %v65 = vpack.c.bf16 %v37, %v36
    %v66 = vpack.c.bf16 %v39, %v38
    %v67 = vpack.c.bf16 %v41, %v40
    %v68 = vpack.c.bf16 %v43, %v42
    %v69 = vpack.c.bf16 %v45, %v44
    %v70 = vpack.c.bf16 %v47, %v46
    %v71 = vpack.c.bf16 %v49, %v48
    %v72 = vpack.c.bf16 %v51, %v50
    %v73 = vpack.c.bf16 %v53, %v52
    %v74 = vpack.c.bf16 %v55, %v54
    %v75 = vpack.c.bf16 %v57, %v56
    %v76 = vpack.c.bf16 %v59, %v58
    %v77 = vpack.c.bf16 %v61, %v60
    %v78 = vld [vmem:[%s1] sm:$0xf]
    %v79 = vld [vmem:[%s1 + $0x4] sm:$0xf]
    %v80 = vld [vmem:[%s1 + $0x8] sm:$0xf]
    %v81 = vld [vmem:[%s1 + $0xc] sm:$0xf]
    %v86 = vunpack.c.l.b16 %v78
    %v87 = vunpack.c.l.b16 %v79
    %v88 = vunpack.c.l.b16 %v80
    %v89 = vunpack.c.l.b16 %v81
    %v90 = vpack.c.b16 %v87, %v86
    %v91 = vpack.c.b16 %v89, %v88
    %vm92 = vcmask 130048
    %v94 = vsel %vm92, %v90, 0
    %v97 = vsel %vm92, %v91, 0
    %v100 = vsel %vm92, %v62, 0
    %v103 = vsel %vm92, %v63, 0
    %v106 = vsel %vm92, %v64, 0
    %v109 = vsel %vm92, %v65, 0
    %v112 = vsel %vm92, %v66, 0
    %v115 = vsel %vm92, %v67, 0
    %v118 = vsel %vm92, %v68, 0
    %v121 = vsel %vm92, %v69, 0
    %v124 = vsel %vm92, %v70, 0
    %v127 = vsel %vm92, %v71, 0
    %v130 = vsel %vm92, %v72, 0
    %v133 = vsel %vm92, %v73, 0
    %v136 = vsel %vm92, %v74, 0
    %v139 = vsel %vm92, %v75, 0
    %v142 = vsel %vm92, %v76, 0
    %v145 = vsel %vm92, %v77, 0
    %147 = vmatprep.subr.bf16.mxu0 0
    %148 = vmatpush1.bf16.xpose.msra.mxu0 %v100
    %149 = vmatprep.subr.bf16.mxu0 0
    %150 = vmatpush1.bf16.xpose.msra.mxu0 %v103
    %151 = vmatprep.subr.bf16.mxu0 0
    %152 = vmatpush1.bf16.xpose.msra.mxu0 %v106
    %153 = vmatprep.subr.bf16.mxu0 0
    %154 = vmatpush1.bf16.xpose.msra.mxu0 %v109
    %155 = vmatprep.subr.bf16.mxu0 0
    %156 = vmatpush1.bf16.xpose.msra.mxu0 %v112
    %157 = vmatprep.subr.bf16.mxu0 0
    %158 = vmatpush1.bf16.xpose.msra.mxu0 %v115
    %159 = vmatprep.subr.bf16.mxu0 0
    %160 = vmatpush1.bf16.xpose.msra.mxu0 %v118
    %161 = vmatprep.subr.bf16.mxu0 0
    %162 = vmatpush1.bf16.xpose.msra.mxu0 %v121
    %163 = vmatprep.subr.bf16.mxu0 0
    %164 = vmatpush1.bf16.xpose.msra.mxu0 %v124
    %165 = vmatprep.subr.bf16.mxu0 0
    %166 = vmatpush1.bf16.xpose.msra.mxu0 %v127
    %167 = vmatprep.subr.bf16.mxu0 0
    %168 = vmatpush1.bf16.xpose.msra.mxu0 %v130
    %169 = vmatprep.subr.bf16.mxu0 0
    %170 = vmatpush1.bf16.xpose.msra.mxu0 %v133
    %171 = vmatprep.subr.bf16.mxu0 0
    %172 = vmatpush1.bf16.xpose.msra.mxu0 %v136
    %173 = vmatprep.subr.bf16.mxu0 0
    %174 = vmatpush1.bf16.xpose.msra.mxu0 %v139
    %175 = vmatprep.subr.bf16.mxu0 0
    %176 = vmatpush1.bf16.xpose.msra.mxu0 %v142
    %177 = vmatprep.subr.bf16.mxu0 0
    %178 = vmatpush1.bf16.xpose.msra.mxu0 %v145
    %179 = vmatprep.mubr.bf16.mxu0 0
    %180 = vmatmul.mubr.bf16.gmra.mrb[0].mxu0 %v94
    %v181 = vpop.f32.mrb[0].mxu0
    %v182 = vadd.f32 0.0, %v181
    %v183 = vpop.f32.mrb[0].mxu0
    %v184 = vadd.f32 0.0, %v183
    %v185 = vpop.f32.mrb[0].mxu0
    %v186 = vadd.f32 0.0, %v185
    %v187 = vpop.f32.mrb[0].mxu0
    %v188 = vadd.f32 0.0, %v187
    %189 = vmatprep.mubr.bf16.mxu0 0
    %190 = vmatmul.mubr.bf16.gmra.mrb[0].mxu0 %v97
    %v191 = vpop.f32.mrb[0].mxu0
    %v192 = vadd.f32 0.0, %v191
    %v193 = vpop.f32.mrb[0].mxu0
    %v194 = vadd.f32 0.0, %v193
    %v195 = vpop.f32.mrb[0].mxu0
    %v196 = vadd.f32 0.0, %v195
    %v197 = vpop.f32.mrb[0].mxu0
    %v198 = vadd.f32 0.0, %v197
    %199 = vdwg.mxu0
    %v200 = vpack.c.bf16 %v186, %v182
    %v201 = vpack.c.bf16 %v188, %v184
    %v202 = vpack.c.bf16 %v196, %v192
    %v203 = vpack.c.bf16 %v198, %v194
    %v204 = vld [vmem:[%s2] sm:$0xff]
    %v205 = vld [vmem:[%s2 + $0x8] sm:$0xff]
    %v206 = vld [vmem:[%s2 + $0x10] sm:$0xff]
    %v207 = vld [vmem:[%s2 + $0x18] sm:$0xff]
    %v208 = vpack.c.bf16 %v205, %v204
    %v209 = vpack.c.bf16 %v207, %v206
    %211 = vset.pattern.permute.xlu0 0
    %212 = vperm.xlu0 %211, %v208
    %v213 = vpop.permute.xlu0 %212
    %216 = vset.pattern.permute.xlu0 0
    %217 = vperm.xlu0 %216, %v209
    %v218 = vpop.permute.xlu0 %217
    %v220 = vadd.bf16 %v200, %v213
    %v221 = vadd.bf16 %v201, %v213
    %v222 = vadd.bf16 %v202, %v218
    %v223 = vadd.bf16 %v203, %v218
    %v224 = vmax.bf16 %v220, 0
    %v225 = vmax.bf16 %v221, 0
    %v226 = vmax.bf16 %v222, 0
    %v227 = vmax.bf16 %v223, 0
    %v228 = vld [vmem:[%s3] sm:$0xf]
    %v229 = vld [vmem:[%s3 + $0x4] sm:$0xf]
    %v230 = vld [vmem:[%s3 + $0x8] sm:$0xf]
    %v231 = vld [vmem:[%s3 + $0xc] sm:$0xf]
    %v236 = vunpack.c.l.b16 %v228
    %v237 = vunpack.c.l.b16 %v229
    %v238 = vunpack.c.l.b16 %v230
    %v239 = vunpack.c.l.b16 %v231
    %v240 = vpack.c.b16 %v237, %v236
    %v241 = vpack.c.b16 %v239, %v238
    %vm242 = vcmask 261120
    %v244 = vsel %vm242, %v240, 0
    %v247 = vsel %vm242, %v241, 0
    %249 = vmatprep.subr.bf16.mxu0 %v225
    %250 = vmatpush1.bf16.msra.mxu0 %v224
    %251 = vmatprep.subr.bf16.mxu0 %v227
    %252 = vmatpush1.bf16.msra.mxu0 %v226
    %253 = vmatprep.subr.bf16.mxu0 0
    %254 = vmatpush1.bf16.msra.mxu0 0
    %255 = vmatprep.subr.bf16.mxu0 0
    %256 = vmatpush1.bf16.msra.mxu0 0
    %257 = vmatprep.subr.bf16.mxu0 0
    %258 = vmatpush1.bf16.msra.mxu0 0
    %259 = vmatprep.subr.bf16.mxu0 0
    %260 = vmatpush1.bf16.msra.mxu0 0
    %261 = vmatprep.subr.bf16.mxu0 0
    %262 = vmatpush1.bf16.msra.mxu0 0
    %263 = vmatprep.subr.bf16.mxu0 0
    %264 = vmatpush1.bf16.msra.mxu0 0
    %265 = vmatprep.subr.bf16.mxu0 0
    %266 = vmatpush1.bf16.msra.mxu0 0
    %267 = vmatprep.subr.bf16.mxu0 0
    %268 = vmatpush1.bf16.msra.mxu0 0
    %269 = vmatprep.subr.bf16.mxu0 0
    %270 = vmatpush1.bf16.msra.mxu0 0
    %271 = vmatprep.subr.bf16.mxu0 0
    %272 = vmatpush1.bf16.msra.mxu0 0
    %273 = vmatprep.subr.bf16.mxu0 0
    %274 = vmatpush1.bf16.msra.mxu0 0
    %275 = vmatprep.subr.bf16.mxu0 0
    %276 = vmatpush1.bf16.msra.mxu0 0
    %277 = vmatprep.subr.bf16.mxu0 0
    %278 = vmatpush1.bf16.msra.mxu0 0
    %279 = vmatprep.subr.bf16.mxu0 0
    %280 = vmatpush1.bf16.msra.mxu0 0
    %281 = vmatprep.mubr.bf16.mxu0 0
    %282 = vmatmul.mubr.bf16.gmra.mrb[0].mxu0 %v244
    %v283 = vpop.f32.mrb[0].mxu0
    %v284 = vadd.f32 0.0, %v283
    %v285 = vpop.f32.mrb[0].mxu0
    %v286 = vadd.f32 0.0, %v285
    %v287 = vpop.f32.mrb[0].mxu0
    %v288 = vadd.f32 0.0, %v287
    %v289 = vpop.f32.mrb[0].mxu0
    %v290 = vadd.f32 0.0, %v289
    %291 = vmatprep.mubr.bf16.mxu0 0
    %292 = vmatmul.mubr.bf16.gmra.mrb[0].mxu0 %v247
    %v293 = vpop.f32.mrb[0].mxu0
    %v294 = vadd.f32 0.0, %v293
    %v295 = vpop.f32.mrb[0].mxu0
    %v296 = vadd.f32 0.0, %v295
    %v297 = vpop.f32.mrb[0].mxu0
    %v298 = vadd.f32 0.0, %v297
    %v299 = vpop.f32.mrb[0].mxu0
    %v300 = vadd.f32 0.0, %v299
    %301 = vdwg.mxu0
    %v302 = vpack.c.bf16 %v288, %v284
    %v303 = vpack.c.bf16 %v290, %v286
    %v304 = vpack.c.bf16 %v298, %v294
    %v305 = vpack.c.bf16 %v300, %v296
    %v306 = vld [vmem:[%s4] sm:$0xff]
    %v307 = vld [vmem:[%s4 + $0x8] sm:$0xff]
    %v308 = vld [vmem:[%s4 + $0x10] sm:$0xff]
    %v309 = vld [vmem:[%s4 + $0x18] sm:$0xff]
    %v310 = vpack.c.bf16 %v307, %v306
    %v311 = vpack.c.bf16 %v309, %v308
    %313 = vset.pattern.permute.xlu0 0
    %314 = vperm.xlu0 %313, %v310
    %v315 = vpop.permute.xlu0 %314
    %318 = vset.pattern.permute.xlu0 0
    %319 = vperm.xlu0 %318, %v311
    %v320 = vpop.permute.xlu0 %319
    %v322 = vadd.bf16 %v302, %v315
    %v323 = vadd.bf16 %v303, %v315
    %v324 = vadd.bf16 %v304, %v320
    %v325 = vadd.bf16 %v305, %v320
    %v326 = vmax.bf16 %v322, 0
    %v327 = vmax.bf16 %v323, 0
    %v328 = vmax.bf16 %v324, 0
    %v329 = vmax.bf16 %v325, 0
    %v330 = vld [vmem:[%s5] sm:$0x1]
    %v331 = vunpack.c.l.bf16 %v330
    %332 = vxpose.xlu0.b32.start [1/16] %v331, 128
    %333 = vxpose.xlu0.b32.cont [2/16] 0.0, 128
    %334 = vxpose.xlu0.b32.cont [3/16] 0.0, 128
    %335 = vxpose.xlu0.b32.cont [4/16] 0.0, 128
    %336 = vxpose.xlu0.b32.cont [5/16] 0.0, 128
    %337 = vxpose.xlu0.b32.cont [6/16] 0.0, 128
    %338 = vxpose.xlu0.b32.cont [7/16] 0.0, 128
    %339 = vxpose.xlu0.b32.cont [8/16] 0.0, 128
    %340 = vxpose.xlu0.b32.cont [9/16] 0.0, 128
    %341 = vxpose.xlu0.b32.cont [10/16] 0.0, 128
    %342 = vxpose.xlu0.b32.cont [11/16] 0.0, 128
    %343 = vxpose.xlu0.b32.cont [12/16] 0.0, 128
    %344 = vxpose.xlu0.b32.cont [13/16] 0.0, 128
    %345 = vxpose.xlu0.b32.cont [14/16] 0.0, 128
    %346 = vxpose.xlu0.b32.cont [15/16] 0.0, 128
    %347 = vxpose.xlu0.b32.end [16/16] 0.0, 128
    %v348 = vpop.trf.xlu0
    %v349 = vpop.trf.xlu0
    %v350 = vpop.trf.xlu0
    %v351 = vpop.trf.xlu0
    %v352 = vpop.trf.xlu0
    %v353 = vpop.trf.xlu0
    %v354 = vpop.trf.xlu0
    %v355 = vpop.trf.xlu0
    %v356 = vpop.trf.xlu0
    %v357 = vpop.trf.xlu0
    %v358 = vpop.trf.xlu0
    %v359 = vpop.trf.xlu0
    %v360 = vpop.trf.xlu0
    %v361 = vpop.trf.xlu0
    %v362 = vpop.trf.xlu0
    %v363 = vpop.trf.xlu0
    %v364 = vunpack.c.l.bf16 %v326
    %v365 = vunpack.c.l.bf16 %v327
    %v366 = vunpack.c.h.bf16 %v326
    %v367 = vunpack.c.h.bf16 %v327
    %v368 = vunpack.c.l.bf16 %v328
    %v369 = vunpack.c.l.bf16 %v329
    %v370 = vunpack.c.h.bf16 %v328
    %v371 = vunpack.c.h.bf16 %v329
    %373 = vset.pattern.permute.xlu0 0
    %374 = vperm.xlu0 %373, %v348
    %v375 = vpop.permute.xlu0 %374
    %378 = vset.pattern.permute.xlu0 0
    %379 = vperm.xlu0 %378, %v349
    %v380 = vpop.permute.xlu0 %379
    %383 = vset.pattern.permute.xlu0 0
    %384 = vperm.xlu0 %383, %v350
    %v385 = vpop.permute.xlu0 %384
    %388 = vset.pattern.permute.xlu0 0
    %389 = vperm.xlu0 %388, %v351
    %v390 = vpop.permute.xlu0 %389
    %v392 = vmul.f32 %v375, %v364
    %v393 = vmul.f32 %v375, %v365
    %v394 = vmul.f32 %v380, %v366
    %v395 = vmul.f32 %v380, %v367
    %v396 = vmul.f32 %v385, %v368
    %v397 = vmul.f32 %v385, %v369
    %v398 = vmul.f32 %v390, %v370
    %v399 = vmul.f32 %v390, %v371
    %v400 = vadd.f32 %v392, %v394
    %v401 = vadd.f32 %v400, %v396
    %v402 = vadd.f32 %v401, %v398
    %v403 = vrot.slane %v402, 4
    %v404 = vadd.f32 %v402, %v403
    %v405 = vrot.slane %v404, 2
    %v406 = vadd.f32 %v404, %v405
    %v407 = vrot.slane %v406, 1
    %v408 = vadd.f32 %v406, %v407
    %v409 = vadd.f32 %v393, %v395
    %v410 = vadd.f32 %v409, %v397
    %v411 = vadd.f32 %v410, %v399
    %v412 = vrot.slane %v411, 4
    %v413 = vadd.f32 %v411, %v412
    %v414 = vrot.slane %v413, 2
    %v415 = vadd.f32 %v413, %v414
    %v416 = vrot.slane %v415, 1
    %v417 = vadd.f32 %v415, %v416
    %v418 = vld [vmem:[#allocation2] sm:$0x1]
    %420 = vset.pattern.permute.xlu0 0
    %421 = vperm.xlu0 %420, %v418
    %v422 = vpop.permute.xlu0 %421
    %v424 = vlaneseq
    %v425 = vshrl.u32 %v424, 7
    %v426 = vsub.s32 0, %v425
    %v427 = vrot.slane %v422, %v426
    %v428 = vadd.f32 %v408, %v427
    %v429 = vadd.f32 %v417, %v427
    %v432 = vcombine.low %v428, %v429
    %v434 = vunpack.c.l.s4 1966171168
    %v435 = vunpack.c.0.s8 %v434
    %v436 = vlaneseq
    %v437 = vshrl.u32 %v436, 7
    %v438 = vsub.s32 %v435, %v437
    %v439 = vrot.slane %v432, %v438
    %v441 = vunpack.c.l.s4 1966171168
    %v442 = vunpack.c.0.s8 %v441
    %v443 = vlaneseq
    %v444 = vshrl.u32 %v443, 7
    %v445 = vsub.s32 %v442, %v444
    %v446 = vrot.slane %v439, %v445
    %v448 = vlaneseq
    %vm449 = vcmp.ge.s32.totalorder %v448, 0
    %vm450 = vcmp.lt.s32.totalorder %v448, 256
    %vm451 = vmand %vm449, %vm450
    %452 = vst.msk [vmem:[#allocation3] sm:$0x3] %vm451, %v446
    // Predicated region
    $region30: #{tpu_custom_call.1} parent=1 // pred_check
      _
    $region31: #{tpu_custom_call.1} parent=1 // pred_check_branch
      %454 = sbr.rel (0) target = $region33
    $region32: #{tpu_custom_call.1} parent=1 // pred_region
      %s456 = ssub.s32 32, 32
      %457 = vsyncadd [#allocation4], %s456
      %s459 = sshll.u32 [#allocation3], 4
      %s460 = int_to_ptr.vmem [resolvable:$true] %s459
      %462 = dma.vmem_to_hbm [thread:$0]  %s460, 32, %s7, [#allocation4]
    $region33: #{tpu_custom_call.1} parent=1 // pred_fallthru
      _
    // Predicated region
    $region34: #{tpu_custom_call.1} parent=1 // pred_check
      _
    $region35: #{tpu_custom_call.1} parent=1 // pred_check_branch
      %464 = sbr.rel (0) target = $region37
    $region36: #{tpu_custom_call.1} parent=1 // pred_region
      %465 = dma.done [#allocation4], 32
    $region37: #{tpu_custom_call.1} parent=1 // pred_fallthru
      _
    %466 = vsyncpa [#allocation4], 1

</llo_original>
